<compile_context>
chip_gen: v5e
topology: v5e:2x2
jax: 0.10.0
libtpu: 0.0.40
codegen_flags: <defaults>
</compile_context>

<pallas_src>
from functools import partial

import numpy as np
import jax
import jax.numpy as jnp
from jax.experimental import pallas as pl
from jax.experimental.pallas import tpu as pltpu


def _round_up(x, m):
    return ((x + m - 1) // m) * m


def _union_kernel(idx_ref, feat_ref, out_ref, acc_ref, *, num_inputs):
    """One (tm, tk) chunk of the multi-hot selection matmul.

    idx_ref:  (tm, K)   int32, global row id in the concatenated table, -1 = absent
    feat_ref: (tk, Cp)  feature-table chunk (native dtype)
    out_ref:  (tm, Cp)  output tile (written on the last reduction step)
    acc_ref:  (tm, Cp)  f32 VMEM accumulator
    """
    j = pl.program_id(1)

    @pl.when(j == 0)
    def _init():
        acc_ref[...] = jnp.zeros_like(acc_ref)

    tm = out_ref.shape[0]
    tk = feat_ref.shape[0]

    idx = idx_ref[...]                                              # (tm, K)
    col_ids = jax.lax.broadcasted_iota(jnp.int32, (tm, tk), 1) + j * tk

    # Multi-hot selection mask: at most one hit per (row, column); per-input
    # index ranges are disjoint, so OR across inputs equals the sum.
    hits = idx[:, 0:1] == col_ids
    for k in range(1, num_inputs):
        hits = hits | (idx[:, k:k + 1] == col_ids)

    mask = hits.astype(feat_ref.dtype)                              # native-dtype MXU operand
    acc_ref[...] += jnp.dot(mask, feat_ref[...],
                            preferred_element_type=jnp.float32)

    @pl.when(j == pl.num_programs(1) - 1)
    def _finalize():
        out_ref[...] = acc_ref[...].astype(out_ref.dtype)


def minkowski_union_pallas(gather_idx, feats, n_out, tm=None, tk=None):
    """Union scatter-add of features via a tiled multi-hot matmul.

    gather_idx: list of K int arrays (n_out,): g_k[j] = row of input k matching
                union coordinate j, or -1 if absent.
    feats:      list of K (N_k, C) float arrays (same C, same dtype).
    """
    K = len(feats)
    assert K == len(gather_idx) and K >= 2
    C = int(feats[0].shape[1])
    dtype = feats[0].dtype
    for f in feats:
        assert int(f.shape[1]) == C and f.dtype == dtype

    n_counts = [int(f.shape[0]) for f in feats]
    n_total = int(np.sum(n_counts))

    # MXU-shaped tiles: lane-dense channels, tm/tk multiples of 128/256.
    if tm is None:
        tm = min(256, _round_up(max(n_out, 1), 128))
    if tk is None:
        tk = min(512, _round_up(max(n_total, 1), 256))
    c_pad = _round_up(max(C, 1), 128)
    n_out_pad = _round_up(max(n_out, 1), tm)
    n_tot_pad = _round_up(n_total, tk)

    # Host-side (numpy) index prep: offset each input's gather indices into the
    # concatenated table and stack into one (n_out_pad, K) int32 array.
    offsets = np.cumsum([0] + n_counts)[:-1]
    gidx_all = np.full((n_out_pad, K), -1, np.int32)
    for k, g in enumerate(gather_idx):
        g = np.asarray(g, np.int64)
        gidx_all[:n_out, k] = np.where(g >= 0, g + offsets[k], -1).astype(np.int32)
    gidx_all = jnp.asarray(gidx_all)

    # Concatenated, zero-padded feature table (n_tot_pad, c_pad).
    feats_cat = jnp.concatenate([jnp.asarray(f, dtype) for f in feats], axis=0)
    feats_all = jnp.pad(feats_cat, ((0, n_tot_pad - n_total), (0, c_pad - C)))

    kernel = partial(_union_kernel, num_inputs=K)
    out = pl.pallas_call(
        kernel,
        grid=(n_out_pad // tm, n_tot_pad // tk),
        in_specs=[
            pl.BlockSpec((tm, K), lambda i, j: (i, 0)),       # gather-index tile
            pl.BlockSpec((tk, c_pad), lambda i, j: (j, 0)),   # feature-table chunk
        ],
        out_specs=pl.BlockSpec((tm, c_pad), lambda i, j: (i, 0)),
        out_shape=jax.ShapeDtypeStruct((n_out_pad, c_pad), dtype),
        scratch_shapes=[pltpu.VMEM((tm, c_pad), jnp.float32)],
        compiler_params=pltpu.CompilerParams(
            dimension_semantics=("parallel", "arbitrary"),
            vmem_limit_bytes=32 * 1024 * 1024,
        ),
    )(gidx_all, feats_all)
    return out[:n_out, :C]


def build_union_maps(coords_list):
    """Host-side 'coords manager': union coords + per-input gather indices."""
    sizes = [int(c.shape[0]) for c in coords_list]
    np_coords = [np.asarray(c) for c in coords_list]
    for c in np_coords:
        # MinkowskiEngine assumes unique coordinates per sparse tensor.
        assert np.unique(c, axis=0).shape[0] == c.shape[0], \
            "duplicate coordinates within a single input are not supported"
    all_coords = np.concatenate(np_coords, axis=0)
    out_coords, inverse = np.unique(all_coords, axis=0, return_inverse=True)
    inverse = np.asarray(inverse).reshape(-1)
    n_out = out_coords.shape[0]

    gather_idx, off = [], 0
    for n_k in sizes:
        g = np.full((n_out,), -1, np.int64)
        g[inverse[off:off + n_k]] = np.arange(n_k)
        gather_idx.append(g)
        off += n_k
    return out_coords, gather_idx


class MinkowskiUnion:
    """JAX/Pallas equivalent of MinkowskiEngine's MinkowskiUnion module."""

    def __init__(self, dimension=-1):
        assert dimension > 0, f"dimension must be a positive integer, {dimension}"
        self.dimension = dimension

    def __call__(self, inputs):
        assert isinstance(inputs, (list, tuple)), "Input must be a list/tuple"
        assert len(inputs) > 1, "input must contain at least 2 sparse tensors"
        coords_list = [c for c, _ in inputs]
        feats_list = [f for _, f in inputs]
        for c in coords_list:
            assert c.shape[1] == self.dimension
        out_coords, gather_idx = build_union_maps(coords_list)
        out_feats = minkowski_union_pallas(gather_idx, feats_list,
                                           out_coords.shape[0])
        return out_coords, out_feats

    def __repr__(self):
        return self.__class__.__name__ + "()"


if __name__ == "__main__":
    key = jax.random.PRNGKey(0)
    D = 2               # coordinate dimension
    C = 32              # in_channels

    # Deterministic coordinates (unique within each input); second input shifted
    # by +1 like the docstring example -> partial overlap with the first.
    coords1 = np.array([[i, j] for i in range(3) for j in range(4)], np.int32)  # (12, 2)
    coords2 = coords1 + 1                                                        # (12, 2)

    k1, k2 = jax.random.split(key)
    f1 = jax.random.normal(k1, (coords1.shape[0], C), jnp.float32)
    f2 = jax.random.normal(k2, (coords2.shape[0], C), jnp.float32)

    union = MinkowskiUnion(D)
    out_coords, out_feats = union([(coords1, f1), (coords2, f2)])
    out_feats = jax.block_until_ready(out_feats)

    # Pure-numpy reference for the union scatter-add.
    out_c_ref, gidx = build_union_maps([coords1, coords2])
    ref = np.zeros((out_c_ref.shape[0], C), np.float32)
    for g, f in zip(gidx, [np.asarray(f1), np.asarray(f2)]):
        valid = g >= 0
        ref[valid] += f[g[valid]]

    assert out_feats.shape == (out_c_ref.shape[0], C)
    assert np.allclose(np.asarray(out_feats), ref, atol=1e-5, rtol=1e-5)
    print("KERNEL_OK")
</pallas_src>

<mosaic_0001>
module attributes {stable_mosaic.version = 11 : i64} {
  func.func @_union_kernel(%arg0: i32, %arg1: i32, %arg2: memref<128x2xi32, #tpu.memory_space<vmem>>, %arg3: memref<256x128xf32, #tpu.memory_space<vmem>>, %arg4: memref<128x128xf32, #tpu.memory_space<vmem>>, %arg5: memref<128x128xf32, #tpu.memory_space<vmem>>) attributes {dimension_semantics = [#tpu.dimension_semantics<parallel>, #tpu.dimension_semantics<arbitrary>], iteration_bounds = array<i64: 1, 1>, scalar_prefetch = 0 : i64, scratch_operands = 1 : i64, tpu.core_type = #tpu.core_type<tc>, window_params = [{transform_indices = @transform_0, window_bounds = array<i64: 128, 2>}, {transform_indices = @transform_1, window_bounds = array<i64: 256, 128>}, {transform_indices = @transform_2, window_bounds = array<i64: 128, 128>}]} {
    %c0_i32 = arith.constant 0 : i32
    %0 = arith.cmpi eq, %arg1, %c0_i32 : i32
    %1 = arith.extui %0 : i1 to i32
    %c0_i32_0 = arith.constant 0 : i32
    %2 = arith.cmpi ne, %1, %c0_i32_0 : i32
    scf.if %2 {
      %cst_10 = arith.constant 0.000000e+00 : f32
      %25 = vector.broadcast %cst_10 : f32 to vector<128x128xf32>
      %c0_11 = arith.constant 0 : index
      %c0_12 = arith.constant 0 : index
      %26 = vector.load %arg5[%c0_11, %c0_12] : memref<128x128xf32, #tpu.memory_space<vmem>>, vector<128x128xf32>
      tpu.vector_store %arg5[%c0_11, %c0_12], %25 {strides = array<i32>} : memref<128x128xf32, #tpu.memory_space<vmem>>, vector<128x128xf32>,
    } else {
    }
    %c0 = arith.constant 0 : index
    %c0_1 = arith.constant 0 : index
    %3 = vector.load %arg2[%c0, %c0_1] : memref<128x2xi32, #tpu.memory_space<vmem>>, vector<128x2xi32>
    %4 = tpu.iota {dimensions = array<i32: 1>} : vector<128x256xi32>
    %c256_i32 = arith.constant 256 : i32
    %5 = arith.muli %arg1, %c256_i32 : i32
    %6 = vector.broadcast %5 : i32 to vector<128x256xi32>
    %7 = arith.addi %4, %6 : vector<128x256xi32>
    %8 = vector.extract_strided_slice %3 {offsets = [0, 0], sizes = [128, 1], strides = [1, 1]} : vector<128x2xi32> to vector<128x1xi32>
    %9 = vector.broadcast %8 : vector<128x1xi32> to vector<128x256xi32>
    %10 = arith.cmpi eq, %9, %7 : vector<128x256xi32>
    %11 = vector.extract_strided_slice %3 {offsets = [0, 1], sizes = [128, 1], strides = [1, 1]} : vector<128x2xi32> to vector<128x1xi32>
    %12 = vector.broadcast %11 : vector<128x1xi32> to vector<128x256xi32>
    %13 = arith.cmpi eq, %12, %7 : vector<128x256xi32>
    %14 = arith.ori %10, %13 : vector<128x256xi1>
    %15 = arith.extui %14 : vector<128x256xi1> to vector<128x256xi32>
    %16 = arith.sitofp %15 : vector<128x256xi32> to vector<128x256xf32>
    %c0_2 = arith.constant 0 : index
    %c0_3 = arith.constant 0 : index
    %17 = vector.load %arg5[%c0_2, %c0_3] : memref<128x128xf32, #tpu.memory_space<vmem>>, vector<128x128xf32>
    %c0_4 = arith.constant 0 : index
    %c0_5 = arith.constant 0 : index
    %18 = vector.load %arg3[%c0_4, %c0_5] : memref<256x128xf32, #tpu.memory_space<vmem>>, vector<256x128xf32>
    %cst = arith.constant dense<0.000000e+00> : vector<128x128xf32>
    %19 = tpu.matmul %16, %18, %cst {dimension_numbers = #tpu.dot_dimension_numbers<[1], [0], [0], [1], [0, 0, 1, 1], [], []>} : vector<128x256xf32>, vector<256x128xf32>, vector<128x128xf32> -> vector<128x128xf32>
    %20 = arith.addf %17, %19 : vector<128x128xf32>
    %c0_6 = arith.constant 0 : index
    %c0_7 = arith.constant 0 : index
    %21 = vector.load %arg5[%c0_6, %c0_7] : memref<128x128xf32, #tpu.memory_space<vmem>>, vector<128x128xf32>
    tpu.vector_store %arg5[%c0_6, %c0_7], %20 {strides = array<i32>} : memref<128x128xf32, #tpu.memory_space<vmem>>, vector<128x128xf32>,
    %c0_i32_8 = arith.constant 0 : i32
    %22 = arith.cmpi eq, %arg1, %c0_i32_8 : i32
    %23 = arith.extui %22 : i1 to i32
    %c0_i32_9 = arith.constant 0 : i32
    %24 = arith.cmpi ne, %23, %c0_i32_9 : i32
    scf.if %24 {
      %c0_10 = arith.constant 0 : index
      %c0_11 = arith.constant 0 : index
      %25 = vector.load %arg5[%c0_10, %c0_11] : memref<128x128xf32, #tpu.memory_space<vmem>>, vector<128x128xf32>
      %c0_12 = arith.constant 0 : index
      %c0_13 = arith.constant 0 : index
      %26 = vector.load %arg4[%c0_12, %c0_13] : memref<128x128xf32, #tpu.memory_space<vmem>>, vector<128x128xf32>
      tpu.vector_store %arg4[%c0_12, %c0_13], %25 {strides = array<i32>} : memref<128x128xf32, #tpu.memory_space<vmem>>, vector<128x128xf32>,
    } else {
    }
    return
  }
  func.func @transform_0(%arg0: i32, %arg1: i32) -> (i32, i32) {
    %c0_i32 = arith.constant 0 : i32
    %c0_i32_0 = arith.constant 0 : i32
    return %arg0, %c0_i32 : i32, i32
  }
  func.func @transform_1(%arg0: i32, %arg1: i32) -> (i32, i32) {
    %c0_i32 = arith.constant 0 : i32
    %c0_i32_0 = arith.constant 0 : i32
    return %arg1, %c0_i32 : i32, i32
  }
  func.func @transform_2(%arg0: i32, %arg1: i32) -> (i32, i32) {
    %c0_i32 = arith.constant 0 : i32
    %c0_i32_0 = arith.constant 0 : i32
    return %arg0, %c0_i32 : i32, i32
  }
}

</mosaic_0001>

<llo_original>
// kernel: tpu_custom_call.1
$region0: #{tpu_custom_call.1}
  #allocation0 [shape = 'u32[]', space=smem, size = 0x4, offset = 0x4, fixed_abs, tag = 'smem constant byte address 0x4 - core index']
  #allocation1 [shape = 'u32[72,128]{1,0:T(1,128)}', space=vmem, size = 0x9000, scoped, tag = 'internal scratch']
  #allocation2 [shape = 'f32[128,128]{1,0:T(8,128)}', space=vmem, size = 0x10000, scoped, tag = 'scratch operand']
  %s0 = inlined_call_operand.vmem [shape: s32[128,2], index: 0, kind: input, shape index: {}]
  %s1 = inlined_call_operand.hbm [shape: f32[256,128], index: 1, kind: input, shape index: {}]
  %s2 = inlined_call_operand.hbm [shape: f32[128,128], index: 2, kind: output, shape index: {}]
  %s3 = sld [smem:[#allocation0]]
  $region30: #{tpu_custom_call.1} parent=0
    _
  %s5 = ssub.s32 1, %s3
  %s6 = scalar_select 0, %s5, %s3
  $region1: #{tpu_custom_call.1} parent=0
    #allocation3 [shape = 'u8[131072]{0}', space=vmem, size = 0x20000, scoped, tag = 'input window, operand 1, single buffered']
    #allocation4 [shape = 's32[1]{0}', space=sflag, size = 0x4, scoped, tag = 'scoped memory for tpu_custom_call.1']
    #allocation5 [shape = 's32[1]{0}', space=sflag, size = 0x4, scoped, tag = 'scoped memory for tpu_custom_call.1']
    #allocation6 [shape = 'u8[65536]{0}', space=vmem, size = 0x10000, scoped, tag = 'output window, operand 0, single buffered']
    %7 = vsyncpa [#allocation4], 0
    %8 = vsyncpa [#allocation5], 0
    // Predicated region
    $region2: #{tpu_custom_call.1} parent=1 // pred_check
      _
    $region3: #{tpu_custom_call.1} parent=1 // pred_check_branch
      %10 = sbr.rel (0) target = $region5
    $region4: #{tpu_custom_call.1} parent=1 // pred_region
      _
    $region5: #{tpu_custom_call.1} parent=1 // pred_fallthru
      _
    // Predicated region
    $region6: #{tpu_custom_call.1} parent=1 // pred_check
      _
    $region7: #{tpu_custom_call.1} parent=1 // pred_check_branch
      %12 = sbr.rel (0) target = $region9
    $region8: #{tpu_custom_call.1} parent=1 // pred_region
      %14 = vsyncadd [#allocation4], 0
      %s15 = sshll.u32 %s1, 4
      %s16 = int_to_ptr.hbm [resolvable:$true] %s15
      %s17 = sshll.u32 [#allocation3], 4
      %s18 = int_to_ptr.vmem [resolvable:$true] %s17
      %23 = dma.hbm_to_vmem [thread:$0]  %s16, 4096, %s18, [#allocation4], 128, 128, 8
    $region9: #{tpu_custom_call.1} parent=1 // pred_fallthru
      _
    // Predicated region
    $region10: #{tpu_custom_call.1} parent=1 // pred_check
      _
    $region11: #{tpu_custom_call.1} parent=1 // pred_check_branch
      %25 = sbr.rel (0) target = $region13
    $region12: #{tpu_custom_call.1} parent=1 // pred_region
      %27 = dma.done [#allocation4], 4096
    $region13: #{tpu_custom_call.1} parent=1 // pred_fallthru
      _
    %p28 = scmp.eq.s32.totalorder 0, 0
    // Predicated region
    $region14: #{tpu_custom_call.1} parent=1 // pred_check
      %p29 = pneg %p28
    $region15: #{tpu_custom_call.1} parent=1 // pred_check_branch
      %31 = sbr.rel (%p29) target = $region17
    $region16: #{tpu_custom_call.1} parent=1 // pred_region
      %32 = vst [vmem:[#allocation2] sm:$0xff] 0.0
      %33 = vst [vmem:[#allocation2 + $0x8] sm:$0xff] 0.0
      %34 = vst [vmem:[#allocation2 + $0x10] sm:$0xff] 0.0
      %35 = vst [vmem:[#allocation2 + $0x18] sm:$0xff] 0.0
      %36 = vst [vmem:[#allocation2 + $0x20] sm:$0xff] 0.0
      %37 = vst [vmem:[#allocation2 + $0x28] sm:$0xff] 0.0
      %38 = vst [vmem:[#allocation2 + $0x30] sm:$0xff] 0.0
      %39 = vst [vmem:[#allocation2 + $0x38] sm:$0xff] 0.0
      %40 = vst [vmem:[#allocation2 + $0x40] sm:$0xff] 0.0
      %41 = vst [vmem:[#allocation2 + $0x48] sm:$0xff] 0.0
      %42 = vst [vmem:[#allocation2 + $0x50] sm:$0xff] 0.0
      %43 = vst [vmem:[#allocation2 + $0x58] sm:$0xff] 0.0
      %44 = vst [vmem:[#allocation2 + $0x60] sm:$0xff] 0.0
      %45 = vst [vmem:[#allocation2 + $0x68] sm:$0xff] 0.0
      %46 = vst [vmem:[#allocation2 + $0x70] sm:$0xff] 0.0
      %47 = vst [vmem:[#allocation2 + $0x78] sm:$0xff] 0.0
    $region17: #{tpu_custom_call.1} parent=1 // pred_fallthru
      _
    %v48 = vld [vmem:[%s0] sm:$0xff]
    %v49 = vld [vmem:[%s0 + $0x8] sm:$0xff]
    %v50 = vld [vmem:[%s0 + $0x10] sm:$0xff]
    %v51 = vld [vmem:[%s0 + $0x18] sm:$0xff]
    %v52 = vld [vmem:[%s0 + $0x20] sm:$0xff]
    %v53 = vld [vmem:[%s0 + $0x28] sm:$0xff]
    %v54 = vld [vmem:[%s0 + $0x30] sm:$0xff]
    %v55 = vld [vmem:[%s0 + $0x38] sm:$0xff]
    %v56 = vld [vmem:[%s0 + $0x40] sm:$0xff]
    %v57 = vld [vmem:[%s0 + $0x48] sm:$0xff]
    %v58 = vld [vmem:[%s0 + $0x50] sm:$0xff]
    %v59 = vld [vmem:[%s0 + $0x58] sm:$0xff]
    %v60 = vld [vmem:[%s0 + $0x60] sm:$0xff]
    %v61 = vld [vmem:[%s0 + $0x68] sm:$0xff]
    %v62 = vld [vmem:[%s0 + $0x70] sm:$0xff]
    %v63 = vld [vmem:[%s0 + $0x78] sm:$0xff]
    %v64 = vlaneseq
    %v65 = vand.u32 %v64, 127
    %v66 = vadd.s32 %v65, 128
    %s67 = smul.u32 0, 256
    %v68 = vstv %s67
    %v69 = vadd.s32 %v65, %v68
    %v70 = vadd.s32 %v66, %v68
    %71 = vset.pattern.permute.xlu0 0
    %72 = vperm.xlu0 %71, %v48
    %v73 = vpop.permute.xlu0 %72
    %74 = vset.pattern.permute.xlu0 0
    %75 = vperm.xlu0 %74, %v49
    %v76 = vpop.permute.xlu0 %75
    %77 = vset.pattern.permute.xlu0 0
    %78 = vperm.xlu0 %77, %v50
    %v79 = vpop.permute.xlu0 %78
    %80 = vset.pattern.permute.xlu0 0
    %81 = vperm.xlu0 %80, %v51
    %v82 = vpop.permute.xlu0 %81
    %83 = vset.pattern.permute.xlu0 0
    %84 = vperm.xlu0 %83, %v52
    %v85 = vpop.permute.xlu0 %84
    %86 = vset.pattern.permute.xlu0 0
    %87 = vperm.xlu0 %86, %v53
    %v88 = vpop.permute.xlu0 %87
    %89 = vset.pattern.permute.xlu0 0
    %90 = vperm.xlu0 %89, %v54
    %v91 = vpop.permute.xlu0 %90
    %92 = vset.pattern.permute.xlu0 0
    %93 = vperm.xlu0 %92, %v55
    %v94 = vpop.permute.xlu0 %93
    %95 = vset.pattern.permute.xlu0 0
    %96 = vperm.xlu0 %95, %v56
    %v97 = vpop.permute.xlu0 %96
    %98 = vset.pattern.permute.xlu0 0
    %99 = vperm.xlu0 %98, %v57
    %v100 = vpop.permute.xlu0 %99
    %101 = vset.pattern.permute.xlu0 0
    %102 = vperm.xlu0 %101, %v58
    %v103 = vpop.permute.xlu0 %102
    %104 = vset.pattern.permute.xlu0 0
    %105 = vperm.xlu0 %104, %v59
    %v106 = vpop.permute.xlu0 %105
    %107 = vset.pattern.permute.xlu0 0
    %108 = vperm.xlu0 %107, %v60
    %v109 = vpop.permute.xlu0 %108
    %110 = vset.pattern.permute.xlu0 0
    %111 = vperm.xlu0 %110, %v61
    %v112 = vpop.permute.xlu0 %111
    %113 = vset.pattern.permute.xlu0 0
    %114 = vperm.xlu0 %113, %v62
    %v115 = vpop.permute.xlu0 %114
    %116 = vset.pattern.permute.xlu0 0
    %117 = vperm.xlu0 %116, %v63
    %v118 = vpop.permute.xlu0 %117
    %vm119 = vcmp.eq.s32.totalorder %v73, %v69
    %vm120 = vcmp.eq.s32.totalorder %v73, %v70
    %vm121 = vcmp.eq.s32.totalorder %v76, %v69
    %vm122 = vcmp.eq.s32.totalorder %v76, %v70
    %vm123 = vcmp.eq.s32.totalorder %v79, %v69
    %vm124 = vcmp.eq.s32.totalorder %v79, %v70
    %vm125 = vcmp.eq.s32.totalorder %v82, %v69
    %vm126 = vcmp.eq.s32.totalorder %v82, %v70
    %vm127 = vcmp.eq.s32.totalorder %v85, %v69
    %vm128 = vcmp.eq.s32.totalorder %v85, %v70
    %vm129 = vcmp.eq.s32.totalorder %v88, %v69
    %vm130 = vcmp.eq.s32.totalorder %v88, %v70
    %vm131 = vcmp.eq.s32.totalorder %v91, %v69
    %vm132 = vcmp.eq.s32.totalorder %v91, %v70
    %vm133 = vcmp.eq.s32.totalorder %v94, %v69
    %vm134 = vcmp.eq.s32.totalorder %v94, %v70
    %vm135 = vcmp.eq.s32.totalorder %v97, %v69
    %vm136 = vcmp.eq.s32.totalorder %v97, %v70
    %vm137 = vcmp.eq.s32.totalorder %v100, %v69
    %vm138 = vcmp.eq.s32.totalorder %v100, %v70
    %vm139 = vcmp.eq.s32.totalorder %v103, %v69
    %vm140 = vcmp.eq.s32.totalorder %v103, %v70
    %vm141 = vcmp.eq.s32.totalorder %v106, %v69
    %vm142 = vcmp.eq.s32.totalorder %v106, %v70
    %vm143 = vcmp.eq.s32.totalorder %v109, %v69
    %vm144 = vcmp.eq.s32.totalorder %v109, %v70
    %vm145 = vcmp.eq.s32.totalorder %v112, %v69
    %vm146 = vcmp.eq.s32.totalorder %v112, %v70
    %vm147 = vcmp.eq.s32.totalorder %v115, %v69
    %vm148 = vcmp.eq.s32.totalorder %v115, %v70
    %vm149 = vcmp.eq.s32.totalorder %v118, %v69
    %vm150 = vcmp.eq.s32.totalorder %v118, %v70
    %151 = vset.pattern.permute.xlu0 1
    %152 = vperm.xlu0 %151, %v48
    %v153 = vpop.permute.xlu0 %152
    %154 = vset.pattern.permute.xlu0 1
    %155 = vperm.xlu0 %154, %v49
    %v156 = vpop.permute.xlu0 %155
    %157 = vset.pattern.permute.xlu0 1
    %158 = vperm.xlu0 %157, %v50
    %v159 = vpop.permute.xlu0 %158
    %160 = vset.pattern.permute.xlu0 1
    %161 = vperm.xlu0 %160, %v51
    %v162 = vpop.permute.xlu0 %161
    %163 = vset.pattern.permute.xlu0 1
    %164 = vperm.xlu0 %163, %v52
    %v165 = vpop.permute.xlu0 %164
    %166 = vset.pattern.permute.xlu0 1
    %167 = vperm.xlu0 %166, %v53
    %v168 = vpop.permute.xlu0 %167
    %169 = vset.pattern.permute.xlu0 1
    %170 = vperm.xlu0 %169, %v54
    %v171 = vpop.permute.xlu0 %170
    %172 = vset.pattern.permute.xlu0 1
    %173 = vperm.xlu0 %172, %v55
    %v174 = vpop.permute.xlu0 %173
    %175 = vset.pattern.permute.xlu0 1
    %176 = vperm.xlu0 %175, %v56
    %v177 = vpop.permute.xlu0 %176
    %178 = vset.pattern.permute.xlu0 1
    %179 = vperm.xlu0 %178, %v57
    %v180 = vpop.permute.xlu0 %179
    %181 = vset.pattern.permute.xlu0 1
    %182 = vperm.xlu0 %181, %v58
    %v183 = vpop.permute.xlu0 %182
    %184 = vset.pattern.permute.xlu0 1
    %185 = vperm.xlu0 %184, %v59
    %v186 = vpop.permute.xlu0 %185
    %187 = vset.pattern.permute.xlu0 1
    %188 = vperm.xlu0 %187, %v60
    %v189 = vpop.permute.xlu0 %188
    %190 = vset.pattern.permute.xlu0 1
    %191 = vperm.xlu0 %190, %v61
    %v192 = vpop.permute.xlu0 %191
    %193 = vset.pattern.permute.xlu0 1
    %194 = vperm.xlu0 %193, %v62
    %v195 = vpop.permute.xlu0 %194
    %196 = vset.pattern.permute.xlu0 1
    %197 = vperm.xlu0 %196, %v63
    %v198 = vpop.permute.xlu0 %197
    %vm199 = vcmp.eq.s32.totalorder %v153, %v69
    %vm200 = vcmp.eq.s32.totalorder %v153, %v70
    %vm201 = vcmp.eq.s32.totalorder %v156, %v69
    %vm202 = vcmp.eq.s32.totalorder %v156, %v70
    %vm203 = vcmp.eq.s32.totalorder %v159, %v69
    %vm204 = vcmp.eq.s32.totalorder %v159, %v70
    %vm205 = vcmp.eq.s32.totalorder %v162, %v69
    %vm206 = vcmp.eq.s32.totalorder %v162, %v70
    %vm207 = vcmp.eq.s32.totalorder %v165, %v69
    %vm208 = vcmp.eq.s32.totalorder %v165, %v70
    %vm209 = vcmp.eq.s32.totalorder %v168, %v69
    %vm210 = vcmp.eq.s32.totalorder %v168, %v70
    %vm211 = vcmp.eq.s32.totalorder %v171, %v69
    %vm212 = vcmp.eq.s32.totalorder %v171, %v70
    %vm213 = vcmp.eq.s32.totalorder %v174, %v69
    %vm214 = vcmp.eq.s32.totalorder %v174, %v70
    %vm215 = vcmp.eq.s32.totalorder %v177, %v69
    %vm216 = vcmp.eq.s32.totalorder %v177, %v70
    %vm217 = vcmp.eq.s32.totalorder %v180, %v69
    %vm218 = vcmp.eq.s32.totalorder %v180, %v70
    %vm219 = vcmp.eq.s32.totalorder %v183, %v69
    %vm220 = vcmp.eq.s32.totalorder %v183, %v70
    %vm221 = vcmp.eq.s32.totalorder %v186, %v69
    %vm222 = vcmp.eq.s32.totalorder %v186, %v70
    %vm223 = vcmp.eq.s32.totalorder %v189, %v69
    %vm224 = vcmp.eq.s32.totalorder %v189, %v70
    %vm225 = vcmp.eq.s32.totalorder %v192, %v69
    %vm226 = vcmp.eq.s32.totalorder %v192, %v70
    %vm227 = vcmp.eq.s32.totalorder %v195, %v69
    %vm228 = vcmp.eq.s32.totalorder %v195, %v70
    %vm229 = vcmp.eq.s32.totalorder %v198, %v69
    %vm230 = vcmp.eq.s32.totalorder %v198, %v70
    %vm231 = vmor %vm119, %vm199
    %vm232 = vmor %vm120, %vm200
    %vm233 = vmor %vm121, %vm201
    %vm234 = vmor %vm122, %vm202
    %vm235 = vmor %vm123, %vm203
    %vm236 = vmor %vm124, %vm204
    %vm237 = vmor %vm125, %vm205
    %vm238 = vmor %vm126, %vm206
    %vm239 = vmor %vm127, %vm207
    %vm240 = vmor %vm128, %vm208
    %vm241 = vmor %vm129, %vm209
    %vm242 = vmor %vm130, %vm210
    %vm243 = vmor %vm131, %vm211
    %vm244 = vmor %vm132, %vm212
    %vm245 = vmor %vm133, %vm213
    %vm246 = vmor %vm134, %vm214
    %vm247 = vmor %vm135, %vm215
    %vm248 = vmor %vm136, %vm216
    %vm249 = vmor %vm137, %vm217
    %vm250 = vmor %vm138, %vm218
    %vm251 = vmor %vm139, %vm219
    %vm252 = vmor %vm140, %vm220
    %vm253 = vmor %vm141, %vm221
    %vm254 = vmor %vm142, %vm222
    %vm255 = vmor %vm143, %vm223
    %vm256 = vmor %vm144, %vm224
    %vm257 = vmor %vm145, %vm225
    %vm258 = vmor %vm146, %vm226
    %vm259 = vmor %vm147, %vm227
    %vm260 = vmor %vm148, %vm228
    %vm261 = vmor %vm149, %vm229
    %vm262 = vmor %vm150, %vm230
    %v263 = vsel %vm231, 1, 0
    %v264 = vsel %vm232, 1, 0
    %v265 = vsel %vm233, 1, 0
    %v266 = vsel %vm234, 1, 0
    %v267 = vsel %vm235, 1, 0
    %v268 = vsel %vm236, 1, 0
    %v269 = vsel %vm237, 1, 0
    %v270 = vsel %vm238, 1, 0
    %v271 = vsel %vm239, 1, 0
    %v272 = vsel %vm240, 1, 0
    %v273 = vsel %vm241, 1, 0
    %v274 = vsel %vm242, 1, 0
    %v275 = vsel %vm243, 1, 0
    %v276 = vsel %vm244, 1, 0
    %v277 = vsel %vm245, 1, 0
    %v278 = vsel %vm246, 1, 0
    %v279 = vsel %vm247, 1, 0
    %v280 = vsel %vm248, 1, 0
    %v281 = vsel %vm249, 1, 0
    %v282 = vsel %vm250, 1, 0
    %v283 = vsel %vm251, 1, 0
    %v284 = vsel %vm252, 1, 0
    %v285 = vsel %vm253, 1, 0
    %v286 = vsel %vm254, 1, 0
    %v287 = vsel %vm255, 1, 0
    %v288 = vsel %vm256, 1, 0
    %v289 = vsel %vm257, 1, 0
    %v290 = vsel %vm258, 1, 0
    %v291 = vsel %vm259, 1, 0
    %v292 = vsel %vm260, 1, 0
    %v293 = vsel %vm261, 1, 0
    %v294 = vsel %vm262, 1, 0
    %v295 = vcvt.s32.f32 %v263
    %v296 = vcvt.s32.f32 %v264
    %v297 = vcvt.s32.f32 %v265
    %v298 = vcvt.s32.f32 %v266
    %v299 = vcvt.s32.f32 %v267
    %v300 = vcvt.s32.f32 %v268
    %v301 = vcvt.s32.f32 %v269
    %v302 = vcvt.s32.f32 %v270
    %v303 = vcvt.s32.f32 %v271
    %v304 = vcvt.s32.f32 %v272
    %v305 = vcvt.s32.f32 %v273
    %v306 = vcvt.s32.f32 %v274
    %v307 = vcvt.s32.f32 %v275
    %v308 = vcvt.s32.f32 %v276
    %v309 = vcvt.s32.f32 %v277
    %v310 = vcvt.s32.f32 %v278
    %v311 = vcvt.s32.f32 %v279
    %v312 = vcvt.s32.f32 %v280
    %v313 = vcvt.s32.f32 %v281
    %v314 = vcvt.s32.f32 %v282
    %v315 = vcvt.s32.f32 %v283
    %v316 = vcvt.s32.f32 %v284
    %v317 = vcvt.s32.f32 %v285
    %v318 = vcvt.s32.f32 %v286
    %v319 = vcvt.s32.f32 %v287
    %v320 = vcvt.s32.f32 %v288
    %v321 = vcvt.s32.f32 %v289
    %v322 = vcvt.s32.f32 %v290
    %v323 = vcvt.s32.f32 %v291
    %v324 = vcvt.s32.f32 %v292
    %v325 = vcvt.s32.f32 %v293
    %v326 = vcvt.s32.f32 %v294
    %v327 = vld [vmem:[#allocation2] sm:$0xff]
    %v328 = vld [vmem:[#allocation2 + $0x8] sm:$0xff]
    %v329 = vld [vmem:[#allocation2 + $0x10] sm:$0xff]
    %v330 = vld [vmem:[#allocation2 + $0x18] sm:$0xff]
    %v331 = vld [vmem:[#allocation2 + $0x20] sm:$0xff]
    %v332 = vld [vmem:[#allocation2 + $0x28] sm:$0xff]
    %v333 = vld [vmem:[#allocation2 + $0x30] sm:$0xff]
    %v334 = vld [vmem:[#allocation2 + $0x38] sm:$0xff]
    %v335 = vld [vmem:[#allocation2 + $0x40] sm:$0xff]
    %v336 = vld [vmem:[#allocation2 + $0x48] sm:$0xff]
    %v337 = vld [vmem:[#allocation2 + $0x50] sm:$0xff]
    %v338 = vld [vmem:[#allocation2 + $0x58] sm:$0xff]
    %v339 = vld [vmem:[#allocation2 + $0x60] sm:$0xff]
    %v340 = vld [vmem:[#allocation2 + $0x68] sm:$0xff]
    %v341 = vld [vmem:[#allocation2 + $0x70] sm:$0xff]
    %v342 = vld [vmem:[#allocation2 + $0x78] sm:$0xff]
    %v343 = vld [vmem:[#allocation3] sm:$0xff]
    %v344 = vld [vmem:[#allocation3 + $0x8] sm:$0xff]
    %v345 = vld [vmem:[#allocation3 + $0x10] sm:$0xff]
    %v346 = vld [vmem:[#allocation3 + $0x18] sm:$0xff]
    %v347 = vld [vmem:[#allocation3 + $0x20] sm:$0xff]
    %v348 = vld [vmem:[#allocation3 + $0x28] sm:$0xff]
    %v349 = vld [vmem:[#allocation3 + $0x30] sm:$0xff]
    %v350 = vld [vmem:[#allocation3 + $0x38] sm:$0xff]
    %v351 = vld [vmem:[#allocation3 + $0x40] sm:$0xff]
    %v352 = vld [vmem:[#allocation3 + $0x48] sm:$0xff]
    %v353 = vld [vmem:[#allocation3 + $0x50] sm:$0xff]
    %v354 = vld [vmem:[#allocation3 + $0x58] sm:$0xff]
    %v355 = vld [vmem:[#allocation3 + $0x60] sm:$0xff]
    %v356 = vld [vmem:[#allocation3 + $0x68] sm:$0xff]
    %v357 = vld [vmem:[#allocation3 + $0x70] sm:$0xff]
    %v358 = vld [vmem:[#allocation3 + $0x78] sm:$0xff]
    %v359 = vld [vmem:[#allocation3 + $0x80] sm:$0xff]
    %v360 = vld [vmem:[#allocation3 + $0x88] sm:$0xff]
    %v361 = vld [vmem:[#allocation3 + $0x90] sm:$0xff]
    %v362 = vld [vmem:[#allocation3 + $0x98] sm:$0xff]
    %v363 = vld [vmem:[#allocation3 + $0xa0] sm:$0xff]
    %v364 = vld [vmem:[#allocation3 + $0xa8] sm:$0xff]
    %v365 = vld [vmem:[#allocation3 + $0xb0] sm:$0xff]
    %v366 = vld [vmem:[#allocation3 + $0xb8] sm:$0xff]
    %v367 = vld [vmem:[#allocation3 + $0xc0] sm:$0xff]
    %v368 = vld [vmem:[#allocation3 + $0xc8] sm:$0xff]
    %v369 = vld [vmem:[#allocation3 + $0xd0] sm:$0xff]
    %v370 = vld [vmem:[#allocation3 + $0xd8] sm:$0xff]
    %v371 = vld [vmem:[#allocation3 + $0xe0] sm:$0xff]
    %v372 = vld [vmem:[#allocation3 + $0xe8] sm:$0xff]
    %v373 = vld [vmem:[#allocation3 + $0xf0] sm:$0xff]
    %v374 = vld [vmem:[#allocation3 + $0xf8] sm:$0xff]
    %375 = vmatpush.msra.mxu0 %v358
    %376 = vmatpush.msra.mxu0 %v357
    %377 = vmatpush.msra.mxu0 %v356
    %378 = vmatpush.msra.mxu0 %v355
    %379 = vmatpush.msra.mxu0 %v354
    %380 = vmatpush.msra.mxu0 %v353
    %381 = vmatpush.msra.mxu0 %v352
    %382 = vmatpush.msra.mxu0 %v351
    %383 = vmatpush.msra.mxu0 %v350
    %384 = vmatpush.msra.mxu0 %v349
    %385 = vmatpush.msra.mxu0 %v348
    %386 = vmatpush.msra.mxu0 %v347
    %387 = vmatpush.msra.mxu0 %v346
    %388 = vmatpush.msra.mxu0 %v345
    %389 = vmatpush.msra.mxu0 %v344
    %390 = vmatpush.msra.mxu0 %v343
    %391 = vmatmul.f32.gmra.mxu0 %v295
    %v392 = vpop.f32.mrf.mxu0
    %v393 = vadd.f32 0.0, %v392
    %394 = vmatmul.f32.gmra.mxu0 %v297
    %v395 = vpop.f32.mrf.mxu0
    %v396 = vadd.f32 0.0, %v395
    %397 = vmatmul.f32.gmra.mxu0 %v299
    %v398 = vpop.f32.mrf.mxu0
    %v399 = vadd.f32 0.0, %v398
    %400 = vmatmul.f32.gmra.mxu0 %v301
    %v401 = vpop.f32.mrf.mxu0
    %v402 = vadd.f32 0.0, %v401
    %403 = vmatmul.f32.gmra.mxu0 %v303
    %v404 = vpop.f32.mrf.mxu0
    %v405 = vadd.f32 0.0, %v404
    %406 = vmatmul.f32.gmra.mxu0 %v305
    %v407 = vpop.f32.mrf.mxu0
    %v408 = vadd.f32 0.0, %v407
    %409 = vmatmul.f32.gmra.mxu0 %v307
    %v410 = vpop.f32.mrf.mxu0
    %v411 = vadd.f32 0.0, %v410
    %412 = vmatmul.f32.gmra.mxu0 %v309
    %v413 = vpop.f32.mrf.mxu0
    %v414 = vadd.f32 0.0, %v413
    %415 = vmatmul.f32.gmra.mxu0 %v311
    %v416 = vpop.f32.mrf.mxu0
    %v417 = vadd.f32 0.0, %v416
    %418 = vmatmul.f32.gmra.mxu0 %v313
    %v419 = vpop.f32.mrf.mxu0
    %v420 = vadd.f32 0.0, %v419
    %421 = vmatmul.f32.gmra.mxu0 %v315
    %v422 = vpop.f32.mrf.mxu0
    %v423 = vadd.f32 0.0, %v422
    %424 = vmatmul.f32.gmra.mxu0 %v317
    %v425 = vpop.f32.mrf.mxu0
    %v426 = vadd.f32 0.0, %v425
    %427 = vmatmul.f32.gmra.mxu0 %v319
    %v428 = vpop.f32.mrf.mxu0
    %v429 = vadd.f32 0.0, %v428
    %430 = vmatmul.f32.gmra.mxu0 %v321
    %v431 = vpop.f32.mrf.mxu0
    %v432 = vadd.f32 0.0, %v431
    %433 = vmatmul.f32.gmra.mxu0 %v323
    %v434 = vpop.f32.mrf.mxu0
    %v435 = vadd.f32 0.0, %v434
    %436 = vmatmul.f32.gmra.mxu0 %v325
    %v437 = vpop.f32.mrf.mxu0
    %v438 = vadd.f32 0.0, %v437
    %439 = vdwg.mxu0
    %440 = vmatpush.msra.mxu0 %v374
    %441 = vmatpush.msra.mxu0 %v373
    %442 = vmatpush.msra.mxu0 %v372
    %443 = vmatpush.msra.mxu0 %v371
    %444 = vmatpush.msra.mxu0 %v370
    %445 = vmatpush.msra.mxu0 %v369
    %446 = vmatpush.msra.mxu0 %v368
    %447 = vmatpush.msra.mxu0 %v367
    %448 = vmatpush.msra.mxu0 %v366
    %449 = vmatpush.msra.mxu0 %v365
    %450 = vmatpush.msra.mxu0 %v364
    %451 = vmatpush.msra.mxu0 %v363
    %452 = vmatpush.msra.mxu0 %v362
    %453 = vmatpush.msra.mxu0 %v361
    %454 = vmatpush.msra.mxu0 %v360
    %455 = vmatpush.msra.mxu0 %v359
    %456 = vmatmul.f32.gmra.mxu0 %v296
    %v457 = vpop.f32.mrf.mxu0
    %v458 = vadd.f32 %v393, %v457
    %459 = vmatmul.f32.gmra.mxu0 %v298
    %v460 = vpop.f32.mrf.mxu0
    %v461 = vadd.f32 %v396, %v460
    %462 = vmatmul.f32.gmra.mxu0 %v300
    %v463 = vpop.f32.mrf.mxu0
    %v464 = vadd.f32 %v399, %v463
    %465 = vmatmul.f32.gmra.mxu0 %v302
    %v466 = vpop.f32.mrf.mxu0
    %v467 = vadd.f32 %v402, %v466
    %468 = vmatmul.f32.gmra.mxu0 %v304
    %v469 = vpop.f32.mrf.mxu0
    %v470 = vadd.f32 %v405, %v469
    %471 = vmatmul.f32.gmra.mxu0 %v306
    %v472 = vpop.f32.mrf.mxu0
    %v473 = vadd.f32 %v408, %v472
    %474 = vmatmul.f32.gmra.mxu0 %v308
    %v475 = vpop.f32.mrf.mxu0
    %v476 = vadd.f32 %v411, %v475
    %477 = vmatmul.f32.gmra.mxu0 %v310
    %v478 = vpop.f32.mrf.mxu0
    %v479 = vadd.f32 %v414, %v478
    %480 = vmatmul.f32.gmra.mxu0 %v312
    %v481 = vpop.f32.mrf.mxu0
    %v482 = vadd.f32 %v417, %v481
    %483 = vmatmul.f32.gmra.mxu0 %v314
    %v484 = vpop.f32.mrf.mxu0
    %v485 = vadd.f32 %v420, %v484
    %486 = vmatmul.f32.gmra.mxu0 %v316
    %v487 = vpop.f32.mrf.mxu0
    %v488 = vadd.f32 %v423, %v487
    %489 = vmatmul.f32.gmra.mxu0 %v318
    %v490 = vpop.f32.mrf.mxu0
    %v491 = vadd.f32 %v426, %v490
    %492 = vmatmul.f32.gmra.mxu0 %v320
    %v493 = vpop.f32.mrf.mxu0
    %v494 = vadd.f32 %v429, %v493
    %495 = vmatmul.f32.gmra.mxu0 %v322
    %v496 = vpop.f32.mrf.mxu0
    %v497 = vadd.f32 %v432, %v496
    %498 = vmatmul.f32.gmra.mxu0 %v324
    %v499 = vpop.f32.mrf.mxu0
    %v500 = vadd.f32 %v435, %v499
    %501 = vmatmul.f32.gmra.mxu0 %v326
    %v502 = vpop.f32.mrf.mxu0
    %v503 = vadd.f32 %v438, %v502
    %504 = vdwg.mxu0
    %v505 = vadd.f32 %v327, %v458
    %v506 = vadd.f32 %v328, %v461
    %v507 = vadd.f32 %v329, %v464
    %v508 = vadd.f32 %v330, %v467
    %v509 = vadd.f32 %v331, %v470
    %v510 = vadd.f32 %v332, %v473
    %v511 = vadd.f32 %v333, %v476
    %v512 = vadd.f32 %v334, %v479
    %v513 = vadd.f32 %v335, %v482
    %v514 = vadd.f32 %v336, %v485
    %v515 = vadd.f32 %v337, %v488
    %v516 = vadd.f32 %v338, %v491
    %v517 = vadd.f32 %v339, %v494
    %v518 = vadd.f32 %v340, %v497
    %v519 = vadd.f32 %v341, %v500
    %v520 = vadd.f32 %v342, %v503
    %521 = vst [vmem:[#allocation2] sm:$0xff] %v505
    %522 = vst [vmem:[#allocation2 + $0x8] sm:$0xff] %v506
    %523 = vst [vmem:[#allocation2 + $0x10] sm:$0xff] %v507
    %524 = vst [vmem:[#allocation2 + $0x18] sm:$0xff] %v508
    %525 = vst [vmem:[#allocation2 + $0x20] sm:$0xff] %v509
    %526 = vst [vmem:[#allocation2 + $0x28] sm:$0xff] %v510
    %527 = vst [vmem:[#allocation2 + $0x30] sm:$0xff] %v511
    %528 = vst [vmem:[#allocation2 + $0x38] sm:$0xff] %v512
    %529 = vst [vmem:[#allocation2 + $0x40] sm:$0xff] %v513
    %530 = vst [vmem:[#allocation2 + $0x48] sm:$0xff] %v514
    %531 = vst [vmem:[#allocation2 + $0x50] sm:$0xff] %v515
    %532 = vst [vmem:[#allocation2 + $0x58] sm:$0xff] %v516
    %533 = vst [vmem:[#allocation2 + $0x60] sm:$0xff] %v517
    %534 = vst [vmem:[#allocation2 + $0x68] sm:$0xff] %v518
    %535 = vst [vmem:[#allocation2 + $0x70] sm:$0xff] %v519
    %536 = vst [vmem:[#allocation2 + $0x78] sm:$0xff] %v520
    // Predicated region
    $region18: #{tpu_custom_call.1} parent=1 // pred_check
      %p537 = pneg %p28
    $region19: #{tpu_custom_call.1} parent=1 // pred_check_branch
      %539 = sbr.rel (%p537) target = $region21
    $region20: #{tpu_custom_call.1} parent=1 // pred_region
      %v540 = vld [vmem:[#allocation2] sm:$0xff]
      %v541 = vld [vmem:[#allocation2 + $0x8] sm:$0xff]
      %v542 = vld [vmem:[#allocation2 + $0x10] sm:$0xff]
      %v543 = vld [vmem:[#allocation2 + $0x18] sm:$0xff]
      %v544 = vld [vmem:[#allocation2 + $0x20] sm:$0xff]
      %v545 = vld [vmem:[#allocation2 + $0x28] sm:$0xff]
      %v546 = vld [vmem:[#allocation2 + $0x30] sm:$0xff]
      %v547 = vld [vmem:[#allocation2 + $0x38] sm:$0xff]
      %v548 = vld [vmem:[#allocation2 + $0x40] sm:$0xff]
      %v549 = vld [vmem:[#allocation2 + $0x48] sm:$0xff]
      %v550 = vld [vmem:[#allocation2 + $0x50] sm:$0xff]
      %v551 = vld [vmem:[#allocation2 + $0x58] sm:$0xff]
      %v552 = vld [vmem:[#allocation2 + $0x60] sm:$0xff]
      %v553 = vld [vmem:[#allocation2 + $0x68] sm:$0xff]
      %v554 = vld [vmem:[#allocation2 + $0x70] sm:$0xff]
      %v555 = vld [vmem:[#allocation2 + $0x78] sm:$0xff]
      %556 = vst [vmem:[#allocation6] sm:$0xff] %v540
      %557 = vst [vmem:[#allocation6 + $0x8] sm:$0xff] %v541
      %558 = vst [vmem:[#allocation6 + $0x10] sm:$0xff] %v542
      %559 = vst [vmem:[#allocation6 + $0x18] sm:$0xff] %v543
      %560 = vst [vmem:[#allocation6 + $0x20] sm:$0xff] %v544
      %561 = vst [vmem:[#allocation6 + $0x28] sm:$0xff] %v545
      %562 = vst [vmem:[#allocation6 + $0x30] sm:$0xff] %v546
      %563 = vst [vmem:[#allocation6 + $0x38] sm:$0xff] %v547
      %564 = vst [vmem:[#allocation6 + $0x40] sm:$0xff] %v548
      %565 = vst [vmem:[#allocation6 + $0x48] sm:$0xff] %v549
      %566 = vst [vmem:[#allocation6 + $0x50] sm:$0xff] %v550
      %567 = vst [vmem:[#allocation6 + $0x58] sm:$0xff] %v551
      %568 = vst [vmem:[#allocation6 + $0x60] sm:$0xff] %v552
      %569 = vst [vmem:[#allocation6 + $0x68] sm:$0xff] %v553
      %570 = vst [vmem:[#allocation6 + $0x70] sm:$0xff] %v554
      %571 = vst [vmem:[#allocation6 + $0x78] sm:$0xff] %v555
    $region21: #{tpu_custom_call.1} parent=1 // pred_fallthru
      _
    // Predicated region
    $region22: #{tpu_custom_call.1} parent=1 // pred_check
      _
    $region23: #{tpu_custom_call.1} parent=1 // pred_check_branch
      %573 = sbr.rel (0) target = $region25
    $region24: #{tpu_custom_call.1} parent=1 // pred_region
      %575 = vsyncadd [#allocation5], 0
      %s576 = sshll.u32 [#allocation6], 4
      %s577 = int_to_ptr.vmem [resolvable:$true] %s576
      %s578 = sshll.u32 %s2, 4
      %s579 = int_to_ptr.hbm [resolvable:$true] %s578
      %584 = dma.vmem_to_hbm [thread:$0]  %s577, 2048, %s579, [#allocation5], 128, 128, 8
    $region25: #{tpu_custom_call.1} parent=1 // pred_fallthru
      _
    // Predicated region
    $region26: #{tpu_custom_call.1} parent=1 // pred_check
      _
    $region27: #{tpu_custom_call.1} parent=1 // pred_check_branch
      %586 = sbr.rel (0) target = $region29
    $region28: #{tpu_custom_call.1} parent=1 // pred_region
      %588 = dma.done [#allocation5], 2048
    $region29: #{tpu_custom_call.1} parent=1 // pred_fallthru
      _
    %589 = vsyncpa [#allocation4], 1
    %590 = vsyncpa [#allocation5], 1

</llo_original>
